<compile_context>
chip_gen: v7x
topology: tpu7x:2x2x1
jax: 0.10.0
libtpu: 0.0.40
codegen_flags: <defaults>
</compile_context>

<pallas_src>
import jax
import jax.numpy as jnp
from jax.experimental import pallas as pl
from jax.experimental.pallas import tpu as pltpu


def _mask_where_kernel(x_ref, m_ref, mf_ref, o_ref):
    # x_ref : (TM, W)  x.dtype     current row tile of the input
    # m_ref : (TM, 1) or (TM, W) int8   0/1 mask (broadcasts over lanes)
    # mf_ref: (1, W)   x.dtype     learned mask feature, resident across grid
    # o_ref : (TM, W)  x.dtype
    o_ref[...] = jnp.where(m_ref[...] != 0, mf_ref[...], x_ref[...])


def new_mask_input_layer(x, masked_position, mask_feature, *, target_tile_bytes=1 << 20):
    """x: (B, T, D); masked_position: (B, T) bool; mask_feature: (1, 1, D)."""
    B, T, D = x.shape
    dtype = x.dtype
    itemsize = jnp.dtype(dtype).itemsize
    rows = B * T

    x2 = x.reshape(rows, D)
    m_rows = masked_position.reshape(rows).astype(jnp.int8)
    mf = mask_feature.reshape(D).astype(dtype)  # cast: avoid f32 promotion if x is bf16

    if D % 128 == 0:
        # Already lane-dense; keep the tiny per-row mask (1 byte/row of traffic).
        R, W = rows, D
        xw = x2
        mw = m_rows.reshape(rows, 1)
        mfw = mf.reshape(1, D)
    elif 128 % D == 0 and rows % (128 // D) == 0:
        # Fold 128//D consecutive rows into the lane dim -> unmasked 128-lane stores.
        F = 128 // D
        R, W = rows // F, F * D
        xw = x2.reshape(R, W)
        mw = jnp.repeat(m_rows, D).reshape(R, W)          # int8 full-width mask
        mfw = jnp.tile(mf, F).reshape(1, W)
    else:
        # Fallback (D not a multiple of 128 and not a divisor of 128): correct,
        # but stores are partially masked (vst.msk); acceptable for odd D.
        R, W = rows, D
        xw = x2
        mw = m_rows.reshape(rows, 1)
        mfw = mf.reshape(1, D)

    # Row-tile size: ~target_tile_bytes of x per tile, multiple of 8 sublanes,
    # capped so the padded mask tile stays small. Single full block if R fits.
    tm = max(8, (target_tile_bytes // max(1, W * itemsize)) // 8 * 8)
    tm = min(tm, 8192)
    if R <= tm:
        tm = R  # one block; full-extent dims are exempt from the (8,128) rule
    grid = (pl.cdiv(R, tm),)

    bytes_accessed = 2 * R * W * itemsize + mw.size + W * itemsize

    out2d = pl.pallas_call(
        _mask_where_kernel,
        out_shape=jax.ShapeDtypeStruct((R, W), dtype),
        grid_spec=pltpu.PrefetchScalarGridSpec(
            num_scalar_prefetch=0,
            grid=grid,
            in_specs=[
                pl.BlockSpec((tm, W), lambda r: (r, 0)),
                pl.BlockSpec((tm, mw.shape[1]), lambda r: (r, 0)),
                pl.BlockSpec((1, W), lambda r: (0, 0)),  # constant -> resident in VMEM
            ],
            out_specs=pl.BlockSpec((tm, W), lambda r: (r, 0)),
        ),
        compiler_params=pltpu.CompilerParams(
            dimension_semantics=("parallel",),
        ),
        cost_estimate=pl.CostEstimate(
            flops=R * W, transcendentals=0, bytes_accessed=int(bytes_accessed)
        ),
    )(xw, mw, mfw)

    return out2d.reshape(B, T, D)


if __name__ == "__main__":
    B, T, D = 2, 8, 32  # small shapes: batch=2, seq=8, hidden(out_features)=32

    key = jax.random.PRNGKey(0)
    k_x, k_m, k_p = jax.random.split(key, 3)

    x = jax.random.normal(k_x, (B, T, D), dtype=jnp.float32)
    masked_position = jax.random.bernoulli(k_m, p=0.5, shape=(B, T))
    # Parameter from __init__: torch.empty((1,1,out_features)).normal_()
    mask_feature = jax.random.normal(k_p, (1, 1, D), dtype=jnp.float32)

    out = jax.block_until_ready(new_mask_input_layer(x, masked_position, mask_feature))

    # Reference (pure JAX), same semantics as the PyTorch forward.
    ref = jnp.where(masked_position[..., None], mask_feature, x).astype(x.dtype)
    assert out.shape == (B, T, D)
    assert jnp.allclose(out, ref), "mismatch vs reference"

    print("KERNEL_OK")
</pallas_src>

<mosaic_0001>
module attributes {stable_mosaic.version = 11 : i64} {
  func.func @_mask_where_kernel(%arg0: i32, %arg1: memref<4x128xf32, #tpu.memory_space<vmem>>, %arg2: memref<4x128xi8, #tpu.memory_space<vmem>>, %arg3: memref<1x128xf32, #tpu.memory_space<vmem>>, %arg4: memref<4x128xf32, #tpu.memory_space<vmem>>) attributes {dimension_semantics = [#tpu.dimension_semantics<parallel>], iteration_bounds = array<i64: 1>, scalar_prefetch = 0 : i64, scratch_operands = 0 : i64, tpu.core_type = #tpu.core_type<tc>, window_params = [{transform_indices = @transform_0, window_bounds = array<i64: 4, 128>}, {transform_indices = @transform_1, window_bounds = array<i64: 4, 128>}, {pipeline_mode = #tpu.pipeline_mode<synchronous>, transform_indices = @transform_2, window_bounds = array<i64: 1, 128>}, {transform_indices = @transform_3, window_bounds = array<i64: 4, 128>}]} {
    %c0 = arith.constant 0 : index
    %c0_0 = arith.constant 0 : index
    %0 = vector.load %arg2[%c0, %c0_0] : memref<4x128xi8, #tpu.memory_space<vmem>>, vector<4x128xi8>
    %c0_i8 = arith.constant 0 : i8
    %1 = vector.broadcast %c0_i8 : i8 to vector<4x128xi8>
    %2 = arith.cmpi ne, %0, %1 : vector<4x128xi8>
    %c0_1 = arith.constant 0 : index
    %c0_2 = arith.constant 0 : index
    %3 = vector.load %arg3[%c0_1, %c0_2] : memref<1x128xf32, #tpu.memory_space<vmem>>, vector<1x128xf32>
    %c0_3 = arith.constant 0 : index
    %c0_4 = arith.constant 0 : index
    %4 = vector.load %arg1[%c0_3, %c0_4] : memref<4x128xf32, #tpu.memory_space<vmem>>, vector<4x128xf32>
    %5 = vector.shape_cast %3 : vector<1x128xf32> to vector<1x128xf32>
    %6 = vector.broadcast %5 : vector<1x128xf32> to vector<4x128xf32>
    %7 = arith.select %2, %6, %4 : vector<4x128xi1>, vector<4x128xf32>
    %c0_5 = arith.constant 0 : index
    %c0_6 = arith.constant 0 : index
    %8 = vector.load %arg4[%c0_5, %c0_6] : memref<4x128xf32, #tpu.memory_space<vmem>>, vector<4x128xf32>
    tpu.vector_store %arg4[%c0_5, %c0_6], %7 {strides = array<i32>} : memref<4x128xf32, #tpu.memory_space<vmem>>, vector<4x128xf32>,
    return
  }
  func.func @transform_0(%arg0: i32) -> (i32, i32) {
    %c0_i32 = arith.constant 0 : i32
    %c0_i32_0 = arith.constant 0 : i32
    return %arg0, %c0_i32 : i32, i32
  }
  func.func @transform_1(%arg0: i32) -> (i32, i32) {
    %c0_i32 = arith.constant 0 : i32
    %c0_i32_0 = arith.constant 0 : i32
    return %arg0, %c0_i32 : i32, i32
  }
  func.func @transform_2(%arg0: i32) -> (i32, i32) {
    %c0_i32 = arith.constant 0 : i32
    %c0_i32_0 = arith.constant 0 : i32
    %c0_i32_1 = arith.constant 0 : i32
    return %c0_i32, %c0_i32_0 : i32, i32
  }
  func.func @transform_3(%arg0: i32) -> (i32, i32) {
    %c0_i32 = arith.constant 0 : i32
    %c0_i32_0 = arith.constant 0 : i32
    return %arg0, %c0_i32 : i32, i32
  }
}

</mosaic_0001>

<llo_original>
// kernel: tpu_custom_call.1
$region0: #{tpu_custom_call.1}
  #allocation0 [shape = 'u32[]', space=smem, size = 0x4, offset = 0x4, fixed_abs, tag = 'smem constant byte address 0x4 - core index']
  #allocation1 [shape = 'u32[144,128]{1,0:T(1,128)}', space=vmem, size = 0x12000, scoped, tag = 'internal scratch']
  %s0 = inlined_call_operand.hbm [shape: f32[4,128], index: 0, kind: input, shape index: {}]
  %s1 = inlined_call_operand.vmem [shape: s8[4,128], index: 1, kind: input, shape index: {}]
  %s2 = inlined_call_operand.vmem [shape: f32[1,128], index: 2, kind: input, shape index: {}]
  %s3 = inlined_call_operand.hbm [shape: f32[4,128], index: 3, kind: output, shape index: {}]
  %s4 = sld [smem:[#allocation0]]
  $region26: #{tpu_custom_call.1} parent=0
    _
  %s6 = ssub.s32 1, %s4
  %s7 = scalar_select 0, %s6, %s4
  $region1: #{tpu_custom_call.1} parent=0
    #allocation2 [shape = 'u8[2048]{0}', space=vmem, size = 0x800, scoped, tag = 'input window, operand 0, single buffered']
    #allocation3 [shape = 's32[1]{0}', space=sflag, size = 0x4, scoped, tag = 'scoped memory for tpu_custom_call.1']
    #allocation4 [shape = 's32[1]{0}', space=sflag, size = 0x4, scoped, tag = 'scoped memory for tpu_custom_call.1']
    #allocation5 [shape = 'u8[2048]{0}', space=vmem, size = 0x800, scoped, tag = 'output window, operand 0, single buffered']
    %8 = vsyncpa [#allocation3], 0
    %9 = vsyncpa [#allocation4], 0
    // Predicated region
    $region2: #{tpu_custom_call.1} parent=1 // pred_check
      _
    $region3: #{tpu_custom_call.1} parent=1 // pred_check_branch
      %11 = sbr.rel (0) target = $region5
    $region4: #{tpu_custom_call.1} parent=1 // pred_region
      %s13 = ssub.s32 64, 64
      %14 = vsyncadd [#allocation3], %s13
      %s16 = sshll.u32 [#allocation2], 4
      %s17 = int_to_ptr.vmem [resolvable:$true] %s16
      %19 = dma.hbm_to_vmem [thread:$0]  %s0, 64, %s17, [#allocation3]
    $region5: #{tpu_custom_call.1} parent=1 // pred_fallthru
      _
    // Predicated region
    $region6: #{tpu_custom_call.1} parent=1 // pred_check
      _
    $region7: #{tpu_custom_call.1} parent=1 // pred_check_branch
      %21 = sbr.rel (0) target = $region9
    $region8: #{tpu_custom_call.1} parent=1 // pred_region
      _
    $region9: #{tpu_custom_call.1} parent=1 // pred_fallthru
      _
    // Predicated region
    $region10: #{tpu_custom_call.1} parent=1 // pred_check
      _
    $region11: #{tpu_custom_call.1} parent=1 // pred_check_branch
      %23 = sbr.rel (0) target = $region13
    $region12: #{tpu_custom_call.1} parent=1 // pred_region
      _
    $region13: #{tpu_custom_call.1} parent=1 // pred_fallthru
      _
    // Predicated region
    $region14: #{tpu_custom_call.1} parent=1 // pred_check
      _
    $region15: #{tpu_custom_call.1} parent=1 // pred_check_branch
      %25 = sbr.rel (0) target = $region17
    $region16: #{tpu_custom_call.1} parent=1 // pred_region
      %26 = dma.done [#allocation3], 64
    $region17: #{tpu_custom_call.1} parent=1 // pred_fallthru
      _
    %v29 = vld [vmem:[%s1] sm:$0x1]
    %vm30 = vnez %v29
    %v31 = vld [vmem:[%s2] sm:$0x1]
    %v32 = vld [vmem:[#allocation2] sm:$0xf]
    %v34 = vlaneseq
    %v35 = vshrl.u32 %v34, 7
    %v36 = vsub.s32 0, %v35
    %v37 = vrot.slane %v31, %v36
    %v39 = vsel %vm30, 16843009, 0
    %v40 = vunpack.c.0.s8 %v39
    %vm41 = vcmp.ne.s32.totalorder %v40, 0
    %v42 = vsel %vm41, %v37, %v32
    %43 = vst [vmem:[#allocation5] sm:$0xf] %v42
    // Predicated region
    $region18: #{tpu_custom_call.1} parent=1 // pred_check
      _
    $region19: #{tpu_custom_call.1} parent=1 // pred_check_branch
      %45 = sbr.rel (0) target = $region21
    $region20: #{tpu_custom_call.1} parent=1 // pred_region
      %s47 = ssub.s32 64, 64
      %48 = vsyncadd [#allocation4], %s47
      %s50 = sshll.u32 [#allocation5], 4
      %s51 = int_to_ptr.vmem [resolvable:$true] %s50
      %53 = dma.vmem_to_hbm [thread:$0]  %s51, 64, %s3, [#allocation4]
    $region21: #{tpu_custom_call.1} parent=1 // pred_fallthru
      _
    // Predicated region
    $region22: #{tpu_custom_call.1} parent=1 // pred_check
      _
    $region23: #{tpu_custom_call.1} parent=1 // pred_check_branch
      %55 = sbr.rel (0) target = $region25
    $region24: #{tpu_custom_call.1} parent=1 // pred_region
      %56 = dma.done [#allocation4], 64
    $region25: #{tpu_custom_call.1} parent=1 // pred_fallthru
      _
    %57 = vsyncpa [#allocation3], 1
    %58 = vsyncpa [#allocation4], 1

</llo_original>
